<compile_context>
chip_gen: v6e
topology: v6e:2x2x1
jax: 0.10.0
libtpu: 0.0.40
codegen_flags: <defaults>
</compile_context>

<pallas_src>
import functools

import jax
import jax.numpy as jnp
from jax.experimental import pallas as pl
from jax.experimental.pallas import tpu as pltpu


def _conv_plane(w_ref, x_ref, Wp):
    """3x3 SAME conv of one zero-padded plane as a single im2col matmul.

    w_ref : [Cout, 9*Cin]   folded weights, (dy, dx, ci) column order
    x_ref : [1, Cin, S]     padded plane flattened to Hp*Wp, zero-padded to S
    Returns fp32 [Cout, S].  Positions in the conv zero ring / alignment tail
    hold garbage; callers mask them (stats) or slice them away (output).
    """
    x = x_ref[0]                                   # [Cin, S]
    S = x.shape[-1]
    taps = []
    for dy in range(3):
        for dx in range(3):
            off = (dy - 1) * Wp + (dx - 1)         # tap at p reads x[p + off]
            taps.append(x if off == 0 else pltpu.roll(x, (-off) % S, axis=1))
    patches = jnp.concatenate(taps, axis=0)        # [9*Cin, S], VMEM-only
    return jnp.dot(w_ref[...], patches, preferred_element_type=jnp.float32)


def _conv_stats_kernel(w_ref, mask_ref, x_ref, stats_ref, *, Wp):
    """Pass 1 (stats only): conv + masked per-plane [sum; sum-of-squares].

    stats_ref : [1, 2*Cout, 1]
    """
    y = _conv_plane(w_ref, x_ref, Wp)                          # [Cout, S] fp32
    ym = jnp.concatenate([y, y * y], axis=0) * mask_ref[...]   # [2*Cout, S]
    # Lane reduction as a single ones-matmul on the MXU (one push/pop per plane).
    ones = jnp.ones((ym.shape[-1], 1), dtype=jnp.float32)
    stats_ref[...] = jnp.dot(ym, ones, preferred_element_type=jnp.float32)[None]


def _conv_bn_lrelu_kernel(w_ref, scale_ref, shift_ref, x_ref, o_ref, *, Wp):
    """Pass 2: recompute conv, folded BatchNorm (y*scale + shift), LeakyReLU."""
    y = _conv_plane(w_ref, x_ref, Wp)                          # [Cout, S] fp32
    z = y * scale_ref[...] + shift_ref[...]
    o_ref[...] = jnp.where(z > 0, z, 0.01 * z)[None].astype(o_ref.dtype)


@functools.partial(jax.jit, static_argnames=("use_bf16", "out_dtype"))
def ddense_encoder_initial_block(x_nchw, w_oihw, b, gamma, beta, *,
                                 use_bf16=True, out_dtype=jnp.float32):
    """NCHW in -> NCHW out.  Conv3x3(SAME) + BatchNorm(batch stats) + LeakyReLU."""
    del b  # exactly cancelled by the batch-statistics BatchNorm mean subtraction
    N, Cin, H, W = x_nchw.shape
    Cout = w_oihw.shape[0]
    Hp, Wp = H + 2, W + 2
    S = Hp * Wp
    S_pad = ((S + 127) // 128) * 128          # lane-dense last dim (multiple of 128)

    mm_dtype = jnp.bfloat16 if use_bf16 else jnp.float32

    # Single cheap zero-pad (conv halo + lane alignment).  The kernels build the
    # nine im2col taps in VMEM, so no expanded patch tensor is materialized.
    xp = jnp.pad(x_nchw, ((0, 0), (0, 0), (1, 1), (1, 1))).reshape(N, Cin, S)
    xp = jnp.pad(xp, ((0, 0), (0, 0), (0, S_pad - S))).astype(mm_dtype)

    # Folded weights, column order (dy, dx, ci) matching the tap order above.
    w2 = jnp.transpose(w_oihw, (0, 2, 3, 1)).reshape(Cout, 9 * Cin).astype(mm_dtype)

    # Mask of valid output pixels on the padded flattened grid (excludes the
    # conv zero ring and the alignment tail) so the BN stats stay unbiased.
    row_ok = (jnp.arange(Hp) >= 1) & (jnp.arange(Hp) <= H)
    col_ok = (jnp.arange(Wp) >= 1) & (jnp.arange(Wp) <= W)
    mask = (row_ok[:, None] & col_ok[None, :]).reshape(1, S).astype(jnp.float32)
    mask = jnp.pad(mask, ((0, 0), (0, S_pad - S)))

    # ---- pass 1: per-plane BN partial statistics (no conv-output round trip) --
    stats = pl.pallas_call(
        functools.partial(_conv_stats_kernel, Wp=Wp),
        grid=(N,),
        in_specs=[
            pl.BlockSpec((Cout, 9 * Cin), lambda n: (0, 0)),
            pl.BlockSpec((1, S_pad), lambda n: (0, 0)),
            pl.BlockSpec((1, Cin, S_pad), lambda n: (n, 0, 0)),
        ],
        out_specs=pl.BlockSpec((1, 2 * Cout, 1), lambda n: (n, 0, 0)),
        out_shape=jax.ShapeDtypeStruct((N, 2 * Cout, 1), jnp.float32),
        compiler_params=pltpu.CompilerParams(dimension_semantics=("parallel",)),
    )(w2, mask, xp)

    # ---- tiny global reduction + BN fold (O(Cout) work, stays in XLA) ---------
    count = jnp.float32(N * H * W)
    tot = jnp.sum(stats[:, :, 0], axis=0)                      # [2*Cout]
    mean = tot[:Cout] / count
    var = jnp.maximum(tot[Cout:] / count - mean * mean, 0.0)   # biased (BatchNorm)
    inv = jax.lax.rsqrt(var + 1e-5)
    g = gamma.astype(jnp.float32)
    scale = (g * inv).reshape(Cout, 1)
    shift = (beta.astype(jnp.float32) - mean * g * inv).reshape(Cout, 1)

    # ---- pass 2: recompute conv + normalize + LeakyReLU, lane-dense store -----
    out = pl.pallas_call(
        functools.partial(_conv_bn_lrelu_kernel, Wp=Wp),
        grid=(N,),
        in_specs=[
            pl.BlockSpec((Cout, 9 * Cin), lambda n: (0, 0)),
            pl.BlockSpec((Cout, 1), lambda n: (0, 0)),
            pl.BlockSpec((Cout, 1), lambda n: (0, 0)),
            pl.BlockSpec((1, Cin, S_pad), lambda n: (n, 0, 0)),
        ],
        out_specs=pl.BlockSpec((1, Cout, S_pad), lambda n: (n, 0, 0)),
        out_shape=jax.ShapeDtypeStruct((N, Cout, S_pad), out_dtype),
        compiler_params=pltpu.CompilerParams(dimension_semantics=("parallel",)),
    )(w2, scale, shift, xp)

    # De-pad: trailing-dim reshape + interior slice (only remaining XLA copy).
    out = out[:, :, :S].reshape(N, Cout, Hp, Wp)[:, :, 1:H + 1, 1:W + 1]
    return out


def _reference_initial_block(x_nchw, w_oihw, b, gamma, beta):
    """Pure-JAX (XLA) reference of the same math, for the correctness check."""
    y = jax.lax.conv_general_dilated(
        x_nchw, w_oihw, window_strides=(1, 1), padding="SAME",
        dimension_numbers=("NCHW", "OIHW", "NCHW"))
    y = y + b[None, :, None, None]
    mean = y.mean(axis=(0, 2, 3), keepdims=True)
    var = ((y - mean) ** 2).mean(axis=(0, 2, 3), keepdims=True)
    yn = (y - mean) / jnp.sqrt(var + 1e-5)
    yn = yn * gamma[None, :, None, None] + beta[None, :, None, None]
    return jnp.where(yn > 0, yn, 0.01 * yn)


if __name__ == "__main__":
    # Small shapes consistent with the module: in_channel=4, channel_list=[8, 16]
    N, Cin, H, W = 2, 4, 16, 16
    Cout = 8  # channel_list[0]

    key = jax.random.PRNGKey(0)
    kx, kw, kb, kg, kbe = jax.random.split(key, 5)

    x = jax.random.normal(kx, (N, Cin, H, W), dtype=jnp.float32)
    w = 0.1 * jax.random.normal(kw, (Cout, Cin, 3, 3), dtype=jnp.float32)
    b = 0.1 * jax.random.normal(kb, (Cout,), dtype=jnp.float32)
    gamma = 1.0 + 0.1 * jax.random.normal(kg, (Cout,), dtype=jnp.float32)
    beta = 0.1 * jax.random.normal(kbe, (Cout,), dtype=jnp.float32)

    ref = _reference_initial_block(x, w, b, gamma, beta)

    # fp32-operand path: tight correctness check.
    out_fp32 = jax.block_until_ready(
        ddense_encoder_initial_block(x, w, b, gamma, beta, use_bf16=False))
    assert out_fp32.shape == (N, Cout, H, W), out_fp32.shape
    err_fp32 = float(jnp.max(jnp.abs(out_fp32 - ref)))
    assert err_fp32 < 1e-3, err_fp32

    # Default path (bf16 MXU operands, fp32 accumulation): sanity check only.
    out_bf16 = jax.block_until_ready(
        ddense_encoder_initial_block(x, w, b, gamma, beta))
    err_bf16 = float(jnp.max(jnp.abs(out_bf16.astype(jnp.float32) - ref)))
    assert err_bf16 < 0.15, err_bf16

    print("KERNEL_OK")
</pallas_src>

<mosaic_0001>
module attributes {stable_mosaic.version = 11 : i64} {
  func.func @_conv_stats_kernel(%arg0: i32, %arg1: memref<8x36xf32, #tpu.memory_space<vmem>>, %arg2: memref<1x384xf32, #tpu.memory_space<vmem>>, %arg3: memref<1x4x384xf32, #tpu.memory_space<vmem>>, %arg4: memref<1x16x1xf32, #tpu.memory_space<vmem>>) attributes {dimension_semantics = [#tpu.dimension_semantics<parallel>], iteration_bounds = array<i64: 2>, scalar_prefetch = 0 : i64, scratch_operands = 0 : i64, tpu.core_type = #tpu.core_type<tc>, window_params = [{pipeline_mode = #tpu.pipeline_mode<synchronous>, transform_indices = @transform_0, window_bounds = array<i64: 8, 36>}, {pipeline_mode = #tpu.pipeline_mode<synchronous>, transform_indices = @transform_1, window_bounds = array<i64: 1, 384>}, {transform_indices = @transform_2, window_bounds = array<i64: 1, 4, 384>}, {transform_indices = @transform_3, window_bounds = array<i64: 1, 16, 1>}]} {
    %c0 = arith.constant 0 : index
    %c0_0 = arith.constant 0 : index
    %c0_1 = arith.constant 0 : index
    %0 = vector.load %arg3[%c0, %c0_0, %c0_1] : memref<1x4x384xf32, #tpu.memory_space<vmem>>, vector<1x4x384xf32>
    %1 = vector.shape_cast %0 : vector<1x4x384xf32> to vector<4x384xf32>
    %c19_i32 = arith.constant 19 : i32
    %2 = tpu.dynamic_rotate %1 by %c19_i32 dim 1 : vector<4x384xf32>, i32 -> vector<4x384xf32>
    %c18_i32 = arith.constant 18 : i32
    %3 = tpu.dynamic_rotate %1 by %c18_i32 dim 1 : vector<4x384xf32>, i32 -> vector<4x384xf32>
    %c17_i32 = arith.constant 17 : i32
    %4 = tpu.dynamic_rotate %1 by %c17_i32 dim 1 : vector<4x384xf32>, i32 -> vector<4x384xf32>
    %c1_i32 = arith.constant 1 : i32
    %5 = tpu.dynamic_rotate %1 by %c1_i32 dim 1 : vector<4x384xf32>, i32 -> vector<4x384xf32>
    %c383_i32 = arith.constant 383 : i32
    %6 = tpu.dynamic_rotate %1 by %c383_i32 dim 1 : vector<4x384xf32>, i32 -> vector<4x384xf32>
    %c367_i32 = arith.constant 367 : i32
    %7 = tpu.dynamic_rotate %1 by %c367_i32 dim 1 : vector<4x384xf32>, i32 -> vector<4x384xf32>
    %c366_i32 = arith.constant 366 : i32
    %8 = tpu.dynamic_rotate %1 by %c366_i32 dim 1 : vector<4x384xf32>, i32 -> vector<4x384xf32>
    %c365_i32 = arith.constant 365 : i32
    %9 = tpu.dynamic_rotate %1 by %c365_i32 dim 1 : vector<4x384xf32>, i32 -> vector<4x384xf32>
    %10 = tpu.concatenate %2, %3, %4, %5, %1, %6, %7, %8, %9 in 0 : vector<4x384xf32>, vector<4x384xf32>, vector<4x384xf32>, vector<4x384xf32>, vector<4x384xf32>, vector<4x384xf32>, vector<4x384xf32>, vector<4x384xf32>, vector<4x384xf32> -> vector<36x384xf32>
    %c0_2 = arith.constant 0 : index
    %c0_3 = arith.constant 0 : index
    %11 = vector.load %arg1[%c0_2, %c0_3] : memref<8x36xf32, #tpu.memory_space<vmem>>, vector<8x36xf32>
    %cst = arith.constant dense<0.000000e+00> : vector<8x384xf32>
    %12 = tpu.matmul %11, %10, %cst {dimension_numbers = #tpu.dot_dimension_numbers<[1], [0], [0], [1], [0, 0, 1, 1], [], []>} : vector<8x36xf32>, vector<36x384xf32>, vector<8x384xf32> -> vector<8x384xf32>
    %13 = arith.mulf %12, %12 : vector<8x384xf32>
    %14 = tpu.concatenate %12, %13 in 0 : vector<8x384xf32>, vector<8x384xf32> -> vector<16x384xf32>
    %c0_4 = arith.constant 0 : index
    %c0_5 = arith.constant 0 : index
    %15 = vector.load %arg2[%c0_4, %c0_5] : memref<1x384xf32, #tpu.memory_space<vmem>>, vector<1x384xf32>
    %16 = vector.broadcast %15 : vector<1x384xf32> to vector<16x384xf32>
    %17 = arith.mulf %14, %16 : vector<16x384xf32>
    %cst_6 = arith.constant 1.000000e+00 : f32
    %18 = vector.broadcast %cst_6 : f32 to vector<384x1xf32>
    %cst_7 = arith.constant dense<0.000000e+00> : vector<16x1xf32>
    %19 = tpu.matmul %17, %18, %cst_7 {dimension_numbers = #tpu.dot_dimension_numbers<[1], [0], [0], [1], [0, 0, 1, 1], [], []>} : vector<16x384xf32>, vector<384x1xf32>, vector<16x1xf32> -> vector<16x1xf32>
    %20 = vector.shape_cast %19 : vector<16x1xf32> to vector<1x16x1xf32>
    %c0_8 = arith.constant 0 : index
    %c0_9 = arith.constant 0 : index
    %c0_10 = arith.constant 0 : index
    %21 = vector.load %arg4[%c0_8, %c0_9, %c0_10] : memref<1x16x1xf32, #tpu.memory_space<vmem>>, vector<1x16x1xf32>
    tpu.vector_store %arg4[%c0_8, %c0_9, %c0_10], %20 {strides = array<i32>} : memref<1x16x1xf32, #tpu.memory_space<vmem>>, vector<1x16x1xf32>,
    return
  }
  func.func @transform_0(%arg0: i32) -> (i32, i32) {
    %c0_i32 = arith.constant 0 : i32
    %c0_i32_0 = arith.constant 0 : i32
    %c0_i32_1 = arith.constant 0 : i32
    return %c0_i32, %c0_i32_0 : i32, i32
  }
  func.func @transform_1(%arg0: i32) -> (i32, i32) {
    %c0_i32 = arith.constant 0 : i32
    %c0_i32_0 = arith.constant 0 : i32
    %c0_i32_1 = arith.constant 0 : i32
    return %c0_i32, %c0_i32_0 : i32, i32
  }
  func.func @transform_2(%arg0: i32) -> (i32, i32, i32) {
    %c0_i32 = arith.constant 0 : i32
    %c0_i32_0 = arith.constant 0 : i32
    %c0_i32_1 = arith.constant 0 : i32
    return %arg0, %c0_i32, %c0_i32_0 : i32, i32, i32
  }
  func.func @transform_3(%arg0: i32) -> (i32, i32, i32) {
    %c0_i32 = arith.constant 0 : i32
    %c0_i32_0 = arith.constant 0 : i32
    %c0_i32_1 = arith.constant 0 : i32
    return %arg0, %c0_i32, %c0_i32_0 : i32, i32, i32
  }
}

module attributes {stable_mosaic.version = 11 : i64} {
  func.func @_conv_bn_lrelu_kernel(%arg0: i32, %arg1: memref<8x36xf32, #tpu.memory_space<vmem>>, %arg2: memref<8x1xf32, #tpu.memory_space<vmem>>, %arg3: memref<8x1xf32, #tpu.memory_space<vmem>>, %arg4: memref<1x4x384xf32, #tpu.memory_space<vmem>>, %arg5: memref<1x8x384xf32, #tpu.memory_space<vmem>>) attributes {dimension_semantics = [#tpu.dimension_semantics<parallel>], iteration_bounds = array<i64: 2>, scalar_prefetch = 0 : i64, scratch_operands = 0 : i64, tpu.core_type = #tpu.core_type<tc>, window_params = [{pipeline_mode = #tpu.pipeline_mode<synchronous>, transform_indices = @transform_0, window_bounds = array<i64: 8, 36>}, {pipeline_mode = #tpu.pipeline_mode<synchronous>, transform_indices = @transform_1, window_bounds = array<i64: 8, 1>}, {pipeline_mode = #tpu.pipeline_mode<synchronous>, transform_indices = @transform_2, window_bounds = array<i64: 8, 1>}, {transform_indices = @transform_3, window_bounds = array<i64: 1, 4, 384>}, {transform_indices = @transform_4, window_bounds = array<i64: 1, 8, 384>}]} {
    %c0 = arith.constant 0 : index
    %c0_0 = arith.constant 0 : index
    %c0_1 = arith.constant 0 : index
    %0 = vector.load %arg4[%c0, %c0_0, %c0_1] : memref<1x4x384xf32, #tpu.memory_space<vmem>>, vector<1x4x384xf32>
    %1 = vector.shape_cast %0 : vector<1x4x384xf32> to vector<4x384xf32>
    %c19_i32 = arith.constant 19 : i32
    %2 = tpu.dynamic_rotate %1 by %c19_i32 dim 1 : vector<4x384xf32>, i32 -> vector<4x384xf32>
    %c18_i32 = arith.constant 18 : i32
    %3 = tpu.dynamic_rotate %1 by %c18_i32 dim 1 : vector<4x384xf32>, i32 -> vector<4x384xf32>
    %c17_i32 = arith.constant 17 : i32
    %4 = tpu.dynamic_rotate %1 by %c17_i32 dim 1 : vector<4x384xf32>, i32 -> vector<4x384xf32>
    %c1_i32 = arith.constant 1 : i32
    %5 = tpu.dynamic_rotate %1 by %c1_i32 dim 1 : vector<4x384xf32>, i32 -> vector<4x384xf32>
    %c383_i32 = arith.constant 383 : i32
    %6 = tpu.dynamic_rotate %1 by %c383_i32 dim 1 : vector<4x384xf32>, i32 -> vector<4x384xf32>
    %c367_i32 = arith.constant 367 : i32
    %7 = tpu.dynamic_rotate %1 by %c367_i32 dim 1 : vector<4x384xf32>, i32 -> vector<4x384xf32>
    %c366_i32 = arith.constant 366 : i32
    %8 = tpu.dynamic_rotate %1 by %c366_i32 dim 1 : vector<4x384xf32>, i32 -> vector<4x384xf32>
    %c365_i32 = arith.constant 365 : i32
    %9 = tpu.dynamic_rotate %1 by %c365_i32 dim 1 : vector<4x384xf32>, i32 -> vector<4x384xf32>
    %10 = tpu.concatenate %2, %3, %4, %5, %1, %6, %7, %8, %9 in 0 : vector<4x384xf32>, vector<4x384xf32>, vector<4x384xf32>, vector<4x384xf32>, vector<4x384xf32>, vector<4x384xf32>, vector<4x384xf32>, vector<4x384xf32>, vector<4x384xf32> -> vector<36x384xf32>
    %c0_2 = arith.constant 0 : index
    %c0_3 = arith.constant 0 : index
    %11 = vector.load %arg1[%c0_2, %c0_3] : memref<8x36xf32, #tpu.memory_space<vmem>>, vector<8x36xf32>
    %cst = arith.constant dense<0.000000e+00> : vector<8x384xf32>
    %12 = tpu.matmul %11, %10, %cst {dimension_numbers = #tpu.dot_dimension_numbers<[1], [0], [0], [1], [0, 0, 1, 1], [], []>} : vector<8x36xf32>, vector<36x384xf32>, vector<8x384xf32> -> vector<8x384xf32>
    %c0_4 = arith.constant 0 : index
    %c0_5 = arith.constant 0 : index
    %13 = vector.load %arg2[%c0_4, %c0_5] : memref<8x1xf32, #tpu.memory_space<vmem>>, vector<8x1xf32>
    %14 = vector.broadcast %13 : vector<8x1xf32> to vector<8x384xf32>
    %15 = arith.mulf %12, %14 : vector<8x384xf32>
    %c0_6 = arith.constant 0 : index
    %c0_7 = arith.constant 0 : index
    %16 = vector.load %arg3[%c0_6, %c0_7] : memref<8x1xf32, #tpu.memory_space<vmem>>, vector<8x1xf32>
    %17 = vector.broadcast %16 : vector<8x1xf32> to vector<8x384xf32>
    %18 = arith.addf %15, %17 : vector<8x384xf32>
    %cst_8 = arith.constant 0.000000e+00 : f32
    %19 = vector.broadcast %cst_8 : f32 to vector<8x384xf32>
    %20 = arith.cmpf ogt, %18, %19 : vector<8x384xf32>
    %cst_9 = arith.constant 0.00999999977 : f32
    %21 = vector.broadcast %cst_9 : f32 to vector<8x384xf32>
    %22 = arith.mulf %21, %18 : vector<8x384xf32>
    %23 = arith.select %20, %18, %22 : vector<8x384xi1>, vector<8x384xf32>
    %24 = vector.shape_cast %23 : vector<8x384xf32> to vector<1x8x384xf32>
    %c0_10 = arith.constant 0 : index
    %c0_11 = arith.constant 0 : index
    %c0_12 = arith.constant 0 : index
    %25 = vector.load %arg5[%c0_10, %c0_11, %c0_12] : memref<1x8x384xf32, #tpu.memory_space<vmem>>, vector<1x8x384xf32>
    tpu.vector_store %arg5[%c0_10, %c0_11, %c0_12], %24 {strides = array<i32>} : memref<1x8x384xf32, #tpu.memory_space<vmem>>, vector<1x8x384xf32>,
    return
  }
  func.func @transform_0(%arg0: i32) -> (i32, i32) {
    %c0_i32 = arith.constant 0 : i32
    %c0_i32_0 = arith.constant 0 : i32
    %c0_i32_1 = arith.constant 0 : i32
    return %c0_i32, %c0_i32_0 : i32, i32
  }
  func.func @transform_1(%arg0: i32) -> (i32, i32) {
    %c0_i32 = arith.constant 0 : i32
    %c0_i32_0 = arith.constant 0 : i32
    %c0_i32_1 = arith.constant 0 : i32
    return %c0_i32, %c0_i32_0 : i32, i32
  }
  func.func @transform_2(%arg0: i32) -> (i32, i32) {
    %c0_i32 = arith.constant 0 : i32
    %c0_i32_0 = arith.constant 0 : i32
    %c0_i32_1 = arith.constant 0 : i32
    return %c0_i32, %c0_i32_0 : i32, i32
  }
  func.func @transform_3(%arg0: i32) -> (i32, i32, i32) {
    %c0_i32 = arith.constant 0 : i32
    %c0_i32_0 = arith.constant 0 : i32
    %c0_i32_1 = arith.constant 0 : i32
    return %arg0, %c0_i32, %c0_i32_0 : i32, i32, i32
  }
  func.func @transform_4(%arg0: i32) -> (i32, i32, i32) {
    %c0_i32 = arith.constant 0 : i32
    %c0_i32_0 = arith.constant 0 : i32
    %c0_i32_1 = arith.constant 0 : i32
    return %arg0, %c0_i32, %c0_i32_0 : i32, i32, i32
  }
}

</mosaic_0001>

<llo_original>
// kernel: ddense_encoder_initial_block.3
$region0: #{ddense_encoder_initial_block.3}
  #allocation0 [shape = 'u32[]', space=smem, size = 0x4, offset = 0x4, fixed_abs, tag = 'smem constant byte address 0x4 - core index']
  #allocation1 [shape = 'u32[144,128]{1,0:T(1,128)}', space=vmem, size = 0x12000, scoped, tag = 'internal scratch']
  %s0 = inlined_call_operand.vmem [shape: f32[8,36], index: 0, kind: input, shape index: {}]
  %s1 = inlined_call_operand.vmem [shape: f32[8,1], index: 1, kind: input, shape index: {}]
  %s2 = inlined_call_operand.vmem [shape: f32[8,1], index: 2, kind: input, shape index: {}]
  %s3 = inlined_call_operand.vmem [shape: f32[2,4,384], index: 3, kind: input, shape index: {}]
  %s4 = inlined_call_operand.vmem [shape: f32[2,8,384], index: 4, kind: output, shape index: {}]
  %s5 = sld [smem:[#allocation0]]
  $region49: #{ddense_encoder_initial_block.3} parent=0
    _
  %s7 = ssub.s32 1, %s5
  %s8 = scalar_select 0, %s7, %s5
  loop: start=0, step=1, limit=4
  $region2: #{ddense_encoder_initial_block.3} parent=0 // loop_pre_header
    _
  $region3: #{ddense_encoder_initial_block.3} parent=0 // loop_header
    %s10 = sphi 0, %s14
    %p11 = scmp.ge.s32.totalorder %s10, 4
    %s18 = sphi 0, %s18
    %s20 = sphi 0, %s18
    %s21 = sphi 0, %s20
    %s35 = sphi 0, %s21
    %s39 = sphi 0, %s39
    %s41 = sphi 0, %s39
    %s42 = sphi 0, %s41
    %s56 = sphi 0, %s42
    %s60 = sphi 0, %s60
    %s62 = sphi 0, %s60
    %s63 = sphi 0, %s62
    %s77 = sphi 0, %s63
    %s83 = sphi 0, %s85
    %s86 = sphi 0, %s83
    %s87 = sphi 0, %s86
    %s103 = sphi 0, %s87
    %s109 = sphi 0, %s111
    %s112 = sphi 0, %s109
    %s113 = sphi 0, %s112
    %s129 = sphi 0, %s113
  $region4: #{ddense_encoder_initial_block.3} parent=0 // loop_header_branch
    %13 = sbr.rel (%p11) target = $region8
  $region5: #{ddense_encoder_initial_block.3} parent=0 // loop_body
    %s15 = ssub.s32 %s10, 1
    %s16 = ssub.s32 %s10, 2
    %s17 = sadd.s32 %s10, 1
    %s19 = sadd.s32 %s18, 1
    %p22 = scmp.eq.s32.totalorder %s10, 1
    %p23 = scmp.ne.s32.totalorder %s18, %s20
    %p24 = scmp.eq.s32.totalorder %s10, 0
    %p25 = por %p23, %p24
    %p26 = scmp.ne.s32.totalorder %s18, %s20
    %p27 = scmp.eq.s32.totalorder %s15, 1
    %p28 = por %p26, %p27
    %p29 = scmp.ne.s32.totalorder %s20, %s21
    %p30 = scmp.eq.s32.totalorder %s15, 0
    %p31 = por %p29, %p30
    %p32 = scmp.ne.s32.totalorder %s20, %s21
    %p33 = scmp.eq.s32.totalorder %s16, 1
    %p34 = por %p32, %p33
    %p36 = scmp.ne.s32.totalorder %s21, %s35
    %p37 = scmp.eq.s32.totalorder %s16, 0
    %p38 = por %p36, %p37
    %s40 = sadd.s32 %s39, 1
    %p43 = scmp.eq.s32.totalorder %s10, 1
    %p44 = scmp.ne.s32.totalorder %s39, %s41
    %p45 = scmp.eq.s32.totalorder %s10, 0
    %p46 = por %p44, %p45
    %p47 = scmp.ne.s32.totalorder %s39, %s41
    %p48 = scmp.eq.s32.totalorder %s15, 1
    %p49 = por %p47, %p48
    %p50 = scmp.ne.s32.totalorder %s41, %s42
    %p51 = scmp.eq.s32.totalorder %s15, 0
    %p52 = por %p50, %p51
    %p53 = scmp.ne.s32.totalorder %s41, %s42
    %p54 = scmp.eq.s32.totalorder %s16, 1
    %p55 = por %p53, %p54
    %p57 = scmp.ne.s32.totalorder %s42, %s56
    %p58 = scmp.eq.s32.totalorder %s16, 0
    %p59 = por %p57, %p58
    %s61 = sadd.s32 %s60, 1
    %p64 = scmp.eq.s32.totalorder %s10, 1
    %p65 = scmp.ne.s32.totalorder %s60, %s62
    %p66 = scmp.eq.s32.totalorder %s10, 0
    %p67 = por %p65, %p66
    %p68 = scmp.ne.s32.totalorder %s60, %s62
    %p69 = scmp.eq.s32.totalorder %s15, 1
    %p70 = por %p68, %p69
    %p71 = scmp.ne.s32.totalorder %s62, %s63
    %p72 = scmp.eq.s32.totalorder %s15, 0
    %p73 = por %p71, %p72
    %p74 = scmp.ne.s32.totalorder %s62, %s63
    %p75 = scmp.eq.s32.totalorder %s16, 1
    %p76 = por %p74, %p75
    %p78 = scmp.ne.s32.totalorder %s63, %s77
    %p79 = scmp.eq.s32.totalorder %s16, 0
    %p80 = por %p78, %p79
    %s81 = ssub.s32 %s10, %s17
    %p82 = scmp.eq.s32.totalorder %s81, 0
    %s84 = sadd.s32 %s83, 1
    %s85 = scalar_select %p82, %s83, %s84
    %p88 = pneg %p82
    %p89 = scmp.eq.s32.totalorder %s10, 1
    %p90 = por %p88, %p89
    %p91 = scmp.ne.s32.totalorder %s83, %s86
    %p92 = scmp.eq.s32.totalorder %s10, 0
    %p93 = por %p91, %p92
    %p94 = scmp.ne.s32.totalorder %s83, %s86
    %p95 = scmp.eq.s32.totalorder %s15, 1
    %p96 = por %p94, %p95
    %p97 = scmp.ne.s32.totalorder %s86, %s87
    %p98 = scmp.eq.s32.totalorder %s15, 0
    %p99 = por %p97, %p98
    %p100 = scmp.ne.s32.totalorder %s86, %s87
    %p101 = scmp.eq.s32.totalorder %s16, 1
    %p102 = por %p100, %p101
    %p104 = scmp.ne.s32.totalorder %s87, %s103
    %p105 = scmp.eq.s32.totalorder %s16, 0
    %p106 = por %p104, %p105
    %s107 = ssub.s32 %s10, %s17
    %p108 = scmp.eq.s32.totalorder %s107, 0
    %s110 = sadd.s32 %s109, 1
    %s111 = scalar_select %p108, %s109, %s110
    %p114 = pneg %p108
    %p115 = scmp.eq.s32.totalorder %s10, 1
    %p116 = por %p114, %p115
    %p117 = scmp.ne.s32.totalorder %s109, %s112
    %p118 = scmp.eq.s32.totalorder %s10, 0
    %p119 = por %p117, %p118
    %p120 = scmp.ne.s32.totalorder %s109, %s112
    %p121 = scmp.eq.s32.totalorder %s15, 1
    %p122 = por %p120, %p121
    %p123 = scmp.ne.s32.totalorder %s112, %s113
    %p124 = scmp.eq.s32.totalorder %s15, 0
    %p125 = por %p123, %p124
    %p126 = scmp.ne.s32.totalorder %s112, %s113
    %p127 = scmp.eq.s32.totalorder %s16, 1
    %p128 = por %p126, %p127
    %p130 = scmp.ne.s32.totalorder %s113, %s129
    %p131 = scmp.eq.s32.totalorder %s16, 0
    %p132 = por %p130, %p131
    %p133 = scmp.le.s32.totalorder 1, %s10
    %p134 = scmp.lt.s32.totalorder %s10, 3
    %p135 = pnand %p133, %p134
    %p136 = pneg %p135
    // Predicated region
    $region9: #{ddense_encoder_initial_block.3} parent=5 // pred_check
      _
    $region10: #{ddense_encoder_initial_block.3} parent=5 // pred_check_branch
      %138 = sbr.rel (%p135) target = $region12
    $region11: #{ddense_encoder_initial_block.3} parent=5 // pred_region
      %s139 = ssub.s32 %s10, 1
      // Predicated region
      $region13: #{ddense_encoder_initial_block.3} parent=11 // pred_check
        %p140 = pneg %p31
      $region14: #{ddense_encoder_initial_block.3} parent=11 // pred_check_branch
        %142 = sbr.rel (%p140) target = $region16
      $region15: #{ddense_encoder_initial_block.3} parent=11 // pred_region
        _
      $region16: #{ddense_encoder_initial_block.3} parent=11 // pred_fallthru
        _
      // Predicated region
      $region17: #{ddense_encoder_initial_block.3} parent=11 // pred_check
        %p143 = pneg %p52
      $region18: #{ddense_encoder_initial_block.3} parent=11 // pred_check_branch
        %145 = sbr.rel (%p143) target = $region20
      $region19: #{ddense_encoder_initial_block.3} parent=11 // pred_region
        _
      $region20: #{ddense_encoder_initial_block.3} parent=11 // pred_fallthru
        _
      // Predicated region
      $region21: #{ddense_encoder_initial_block.3} parent=11 // pred_check
        %p146 = pneg %p73
      $region22: #{ddense_encoder_initial_block.3} parent=11 // pred_check_branch
        %148 = sbr.rel (%p146) target = $region24
      $region23: #{ddense_encoder_initial_block.3} parent=11 // pred_region
        _
      $region24: #{ddense_encoder_initial_block.3} parent=11 // pred_fallthru
        _
    $region12: #{ddense_encoder_initial_block.3} parent=5 // pred_fallthru
      _
    %p149 = scmp.lt.s32.totalorder %s10, 2
    // Predicated region
    $region25: #{ddense_encoder_initial_block.3} parent=5 // pred_check
      %p150 = pneg %p149
    $region26: #{ddense_encoder_initial_block.3} parent=5 // pred_check_branch
      %152 = sbr.rel (%p150) target = $region28
    $region27: #{ddense_encoder_initial_block.3} parent=5 // pred_region
      // Predicated region
      $region29: #{ddense_encoder_initial_block.3} parent=27 // pred_check
        %p153 = pneg %p93
      $region30: #{ddense_encoder_initial_block.3} parent=27 // pred_check_branch
        %155 = sbr.rel (%p153) target = $region32
      $region31: #{ddense_encoder_initial_block.3} parent=27 // pred_region
        %p156 = scmp.lt.s32.totalorder %s10, 1
        %s157 = scalar_select %p156, %s10, 1
        %s158 = smul.addr %s157, 3
        %s159 = smul.addr %s158, 4
        %s160 = scalar_lea.vmem %s3, %s159
      $region32: #{ddense_encoder_initial_block.3} parent=27 // pred_fallthru
        _
    $region28: #{ddense_encoder_initial_block.3} parent=5 // pred_fallthru
      _
    %p161 = scmp.le.s32.totalorder 1, %s10
    %p162 = scmp.lt.s32.totalorder %s10, 3
    %p163 = pnand %p161, %p162
    %p164 = pneg %p163
    // Predicated region
    $region33: #{ddense_encoder_initial_block.3} parent=5 // pred_check
      _
    $region34: #{ddense_encoder_initial_block.3} parent=5 // pred_check_branch
      %166 = sbr.rel (%p163) target = $region36
    $region35: #{ddense_encoder_initial_block.3} parent=5 // pred_region
      %s167 = ssub.s32 %s10, 1
      %p168 = pneg %p31
      %p169 = pneg %p28
      %p170 = pneg %p52
      %p171 = pneg %p49
      %p172 = pneg %p73
      %p173 = pneg %p70
      %p174 = scmp.lt.s32.totalorder %s15, 1
      %s175 = scalar_select %p174, %s15, 1
      %s176 = smul.addr %s175, 3
      %s177 = smul.addr %s176, 4
      %s178 = scalar_lea.vmem %s3, %s177
      %p179 = pneg %p99
      %p180 = pneg %p96
      %p181 = pneg %p125
      %p182 = pneg %p122
      %p183 = scmp.lt.s32.totalorder %s15, 1
      %s184 = scalar_select %p183, %s15, 1
      %s185 = smul.addr %s184, 3
      %s186 = smul.addr %s185, 8
      %s187 = scalar_lea.vmem %s4, %s186
      %p188 = scmp.lt.s32.totalorder %s15, 1
      %s189 = scalar_select %p188, %s15, 1
      %s190 = smul.addr %s189, 3
      %s191 = smul.addr %s190, 4
      %s192 = scalar_lea.vmem %s3, %s191
      %p193 = scmp.lt.s32.totalorder %s15, 1
      %s194 = scalar_select %p193, %s15, 1
      %s195 = smul.addr %s194, 3
      %s196 = smul.addr %s195, 8
      %s197 = scalar_lea.vmem %s4, %s196
      %v198 = vld [vmem:[%s192] sm:$0xff]
      %v199 = vld [vmem:[%s192 + $0x8] sm:$0xf]
      %v201 = vcombine.high %v198, %v198
      %203 = vrot.lane.b32.xlu0 %v198, 19
      %v204 = vpop.permute.xlu0 %203
      %205 = vrot.lane.b32.xlu0 %v201, 19
      %v206 = vpop.permute.xlu0 %205
      %207 = vrot.lane.b32.xlu0 %v199, 19
      %v208 = vpop.permute.xlu0 %207
      %v209 = vlaneseq
      %v210 = vand.u32 %v209, 127
      %vm211 = vcmp.lt.s32.totalorder %v210, 19
      %v212 = vsel %vm211, %v206, %v208
      %v213 = vsel %vm211, %v204, %v206
      %v214 = vsel %vm211, %v208, %v204
      %215 = vrot.lane.b32.xlu0 %v198, 18
      %v216 = vpop.permute.xlu0 %215
      %217 = vrot.lane.b32.xlu0 %v201, 18
      %v218 = vpop.permute.xlu0 %217
      %219 = vrot.lane.b32.xlu0 %v199, 18
      %v220 = vpop.permute.xlu0 %219
      %vm221 = vcmp.lt.s32.totalorder %v210, 18
      %v222 = vsel %vm221, %v218, %v220
      %v223 = vsel %vm221, %v216, %v218
      %v224 = vsel %vm221, %v220, %v216
      %225 = vrot.lane.b32.xlu0 %v198, 17
      %v226 = vpop.permute.xlu0 %225
      %227 = vrot.lane.b32.xlu0 %v201, 17
      %v228 = vpop.permute.xlu0 %227
      %229 = vrot.lane.b32.xlu0 %v199, 17
      %v230 = vpop.permute.xlu0 %229
      %vm231 = vcmp.lt.s32.totalorder %v210, 17
      %v232 = vsel %vm231, %v228, %v230
      %v233 = vsel %vm231, %v226, %v228
      %v234 = vsel %vm231, %v230, %v226
      %235 = vrot.lane.b32.xlu0 %v198, 1
      %v236 = vpop.permute.xlu0 %235
      %237 = vrot.lane.b32.xlu0 %v201, 1
      %v238 = vpop.permute.xlu0 %237
      %239 = vrot.lane.b32.xlu0 %v199, 1
      %v240 = vpop.permute.xlu0 %239
      %vm241 = vcmp.lt.s32.totalorder %v210, 1
      %v242 = vsel %vm241, %v238, %v240
      %v243 = vsel %vm241, %v236, %v238
      %v244 = vsel %vm241, %v240, %v236
      %245 = vrot.lane.b32.xlu0 %v198, 127
      %v246 = vpop.permute.xlu0 %245
      %247 = vrot.lane.b32.xlu0 %v201, 127
      %v248 = vpop.permute.xlu0 %247
      %249 = vrot.lane.b32.xlu0 %v199, 127
      %v250 = vpop.permute.xlu0 %249
      %vm251 = vcmp.lt.s32.totalorder %v210, 127
      %v252 = vsel %vm251, %v248, %v250
      %v253 = vsel %vm251, %v246, %v248
      %v254 = vsel %vm251, %v250, %v246
      %255 = vrot.lane.b32.xlu0 %v198, 111
      %v256 = vpop.permute.xlu0 %255
      %257 = vrot.lane.b32.xlu0 %v201, 111
      %v258 = vpop.permute.xlu0 %257
      %259 = vrot.lane.b32.xlu0 %v199, 111
      %v260 = vpop.permute.xlu0 %259
      %vm261 = vcmp.lt.s32.totalorder %v210, 111
      %v262 = vsel %vm261, %v258, %v260
      %v263 = vsel %vm261, %v256, %v258
      %v264 = vsel %vm261, %v260, %v256
      %265 = vrot.lane.b32.xlu0 %v198, 110
      %v266 = vpop.permute.xlu0 %265
      %267 = vrot.lane.b32.xlu0 %v201, 110
      %v268 = vpop.permute.xlu0 %267
      %269 = vrot.lane.b32.xlu0 %v199, 110
      %v270 = vpop.permute.xlu0 %269
      %vm271 = vcmp.lt.s32.totalorder %v210, 110
      %v272 = vsel %vm271, %v268, %v270
      %v273 = vsel %vm271, %v266, %v268
      %v274 = vsel %vm271, %v270, %v266
      %275 = vrot.lane.b32.xlu0 %v198, 109
      %v276 = vpop.permute.xlu0 %275
      %277 = vrot.lane.b32.xlu0 %v201, 109
      %v278 = vpop.permute.xlu0 %277
      %279 = vrot.lane.b32.xlu0 %v199, 109
      %v280 = vpop.permute.xlu0 %279
      %vm281 = vcmp.lt.s32.totalorder %v210, 109
      %v282 = vsel %vm281, %v278, %v280
      %v283 = vsel %vm281, %v276, %v278
      %v284 = vsel %vm281, %v280, %v276
      %v288 = vrot.slane %v224, 4
      %v289 = vrot.slane %v223, 4
      %v290 = vrot.slane %v222, 4
      %v297 = vrot.slane %v244, 4
      %v298 = vrot.slane %v243, 4
      %v299 = vrot.slane %v242, 4
      %v306 = vrot.slane %v253, 4
      %v307 = vrot.slane %v252, 4
      %v308 = vrot.slane %v254, 4
      %v315 = vrot.slane %v273, 4
      %v316 = vrot.slane %v272, 4
      %v317 = vrot.slane %v274, 4
      %vm321 = vcmask 1043456
      %v322 = vsel %vm321, %v214, %v288
      %v323 = vsel %vm321, %v213, %v289
      %v324 = vsel %vm321, %v212, %v290
      %v325 = vsel %vm321, %v234, %v297
      %v326 = vsel %vm321, %v233, %v298
      %v327 = vsel %vm321, %v232, %v299
      %v328 = vsel %vm321, %v198, %v306
      %v329 = vsel %vm321, %v201, %v307
      %v330 = vsel %vm321, %v199, %v308
      %v331 = vsel %vm321, %v263, %v315
      %v332 = vsel %vm321, %v262, %v316
      %v333 = vsel %vm321, %v264, %v317
      %v334 = vld [vmem:[%s0] sm:$0xff]
      %vm335 = vcmask 293888
      %v337 = vsel %vm335, %v334, 0
      %v340 = vsel %vm321, %v283, 0
      %v343 = vsel %vm321, %v282, 0
      %v346 = vsel %vm321, %v284, 0
      %348 = vmatprep.subr.mxu0 0.0
      %349 = vmatpush1.msra.mxu0 0.0
      %350 = vmatprep.subr.mxu0 0.0
      %351 = vmatpush1.msra.mxu0 0.0
      %352 = vmatprep.subr.mxu0 0.0
      %353 = vmatpush1.msra.mxu0 0.0
      %354 = vmatprep.subr.mxu0 0.0
      %355 = vmatpush1.msra.mxu0 0.0
      %356 = vmatprep.subr.mxu0 0.0
      %357 = vmatpush1.msra.mxu0 0.0
      %358 = vmatprep.subr.mxu0 0.0
      %359 = vmatpush1.msra.mxu0 0.0
      %360 = vmatprep.subr.mxu0 0.0
      %361 = vmatpush1.msra.mxu0 0.0
      %362 = vmatprep.subr.mxu0 0.0
      %363 = vmatpush1.msra.mxu0 0.0
      %364 = vmatprep.subr.mxu0 0.0
      %365 = vmatpush1.msra.mxu0 0.0
      %366 = vmatprep.subr.mxu0 0.0
      %367 = vmatpush1.msra.mxu0 0.0
      %368 = vmatprep.subr.mxu0 0.0
      %369 = vmatpush1.msra.mxu0 0.0
      %370 = vmatprep.subr.mxu0 %v343
      %371 = vmatpush1.msra.mxu0 %v340
      %372 = vmatprep.subr.mxu0 %v332
      %373 = vmatpush1.msra.mxu0 %v331
      %374 = vmatprep.subr.mxu0 %v329
      %375 = vmatpush1.msra.mxu0 %v328
      %376 = vmatprep.subr.mxu0 %v326
      %377 = vmatpush1.msra.mxu0 %v325
      %378 = vmatprep.subr.mxu0 %v323
      %379 = vmatpush1.msra.mxu0 %v322
      %380 = vmatprep.subr.mxu0 0.0
      %381 = vmatpush2.msra.mxu0 0.0
      %382 = vmatprep.subr.mxu0 0.0
      %383 = vmatpush2.msra.mxu0 0.0
      %384 = vmatprep.subr.mxu0 0.0
      %385 = vmatpush2.msra.mxu0 0.0
      %386 = vmatprep.subr.mxu0 0.0
      %387 = vmatpush2.msra.mxu0 0.0
      %388 = vmatprep.subr.mxu0 0.0
      %389 = vmatpush2.msra.mxu0 0.0
      %390 = vmatprep.subr.mxu0 0.0
      %391 = vmatpush2.msra.mxu0 0.0
      %392 = vmatprep.subr.mxu0 0.0
      %393 = vmatpush2.msra.mxu0 0.0
      %394 = vmatprep.subr.mxu0 0.0
      %395 = vmatpush2.msra.mxu0 0.0
      %396 = vmatprep.subr.mxu0 0.0
      %397 = vmatpush2.msra.mxu0 0.0
      %398 = vmatprep.subr.mxu0 0.0
      %399 = vmatpush2.msra.mxu0 0.0
      %400 = vmatprep.subr.mxu0 0.0
      %401 = vmatpush2.msra.mxu0 0.0
      %402 = vmatprep.subr.mxu0 0.0
      %403 = vmatpush2.msra.mxu0 0.0
      %404 = vmatprep.subr.mxu0 0.0
      %405 = vmatpush2.msra.mxu0 0.0
      %406 = vmatprep.subr.mxu0 0.0
      %407 = vmatpush2.msra.mxu0 0.0
      %408 = vmatprep.subr.mxu0 0.0
      %409 = vmatpush2.msra.mxu0 0.0
      %410 = vmatprep.subr.mxu0 0.0
      %411 = vmatpush2.msra.mxu0 0.0
      %412 = vmatprep.mubr.f32.mxu0 0.0
      %413 = vmatmul.mubr.f32.gmra.mxu0 %v337
      %v414 = vpop.f32.mrf.mxu0
      %v415 = vadd.f32 0.0, %v414
      %v416 = vpop.f32.mrf.mxu0
      %v417 = vadd.f32 0.0, %v416
      %418 = vdwg.mxu0
      %419 = vmatprep.subr.mxu0 0.0
      %420 = vmatpush1.msra.mxu0 0.0
      %421 = vmatprep.subr.mxu0 0.0
      %422 = vmatpush1.msra.mxu0 0.0
      %423 = vmatprep.subr.mxu0 0.0
      %424 = vmatpush1.msra.mxu0 0.0
      %425 = vmatprep.subr.mxu0 0.0
      %426 = vmatpush1.msra.mxu0 0.0
      %427 = vmatprep.subr.mxu0 0.0
      %428 = vmatpush1.msra.mxu0 0.0
      %429 = vmatprep.subr.mxu0 0.0
      %430 = vmatpush1.msra.mxu0 0.0
      %431 = vmatprep.subr.mxu0 0.0
      %432 = vmatpush1.msra.mxu0 0.0
      %433 = vmatprep.subr.mxu0 0.0
      %434 = vmatpush1.msra.mxu0 0.0
      %435 = vmatprep.subr.mxu0 0.0
      %436 = vmatpush1.msra.mxu0 0.0
      %437 = vmatprep.subr.mxu0 0.0
      %438 = vmatpush1.msra.mxu0 0.0
      %439 = vmatprep.subr.mxu0 0.0
      %440 = vmatpush1.msra.mxu0 0.0
      %441 = vmatprep.subr.mxu0 0.0
      %442 = vmatpush1.msra.mxu0 %v346
      %443 = vmatprep.subr.mxu0 0.0
      %444 = vmatpush1.msra.mxu0 %v333
      %445 = vmatprep.subr.mxu0 0.0
      %446 = vmatpush1.msra.mxu0 %v330
      %447 = vmatprep.subr.mxu0 0.0
      %448 = vmatpush1.msra.mxu0 %v327
      %449 = vmatprep.subr.mxu0 0.0
      %450 = vmatpush1.msra.mxu0 %v324
      %451 = vmatprep.subr.mxu0 0.0
      %452 = vmatpush2.msra.mxu0 0.0
      %453 = vmatprep.subr.mxu0 0.0
      %454 = vmatpush2.msra.mxu0 0.0
      %455 = vmatprep.subr.mxu0 0.0
      %456 = vmatpush2.msra.mxu0 0.0
      %457 = vmatprep.subr.mxu0 0.0
      %458 = vmatpush2.msra.mxu0 0.0
      %459 = vmatprep.subr.mxu0 0.0
      %460 = vmatpush2.msra.mxu0 0.0
      %461 = vmatprep.subr.mxu0 0.0
      %462 = vmatpush2.msra.mxu0 0.0
      %463 = vmatprep.subr.mxu0 0.0
      %464 = vmatpush2.msra.mxu0 0.0
      %465 = vmatprep.subr.mxu0 0.0
      %466 = vmatpush2.msra.mxu0 0.0
      %467 = vmatprep.subr.mxu0 0.0
      %468 = vmatpush2.msra.mxu0 0.0
      %469 = vmatprep.subr.mxu0 0.0
      %470 = vmatpush2.msra.mxu0 0.0
      %471 = vmatprep.subr.mxu0 0.0
      %472 = vmatpush2.msra.mxu0 0.0
      %473 = vmatprep.subr.mxu0 0.0
      %474 = vmatpush2.msra.mxu0 0.0
      %475 = vmatprep.subr.mxu0 0.0
      %476 = vmatpush2.msra.mxu0 0.0
      %477 = vmatprep.subr.mxu0 0.0
      %478 = vmatpush2.msra.mxu0 0.0
      %479 = vmatprep.subr.mxu0 0.0
      %480 = vmatpush2.msra.mxu0 0.0
      %481 = vmatprep.subr.mxu0 0.0
      %482 = vmatpush2.msra.mxu0 0.0
      %483 = vmatprep.mubr.f32.mxu0 0.0
      %484 = vmatmul.mubr.f32.gmra.mxu0 %v337
      %v485 = vpop.f32.mrf.mxu0
      %v486 = vadd.f32 0.0, %v485
      %v487 = vpop.f32.mrf.mxu0
      %488 = vdwg.mxu0
      %v489 = vld [vmem:[%s1] sm:$0xff]
      %491 = vset.pattern.permute.xlu0 0
      %492 = vperm.xlu0 %491, %v489
      %v493 = vpop.permute.xlu0 %492
      %v495 = vmul.f32 %v415, %v493
      %v496 = vmul.f32 %v417, %v493
      %v497 = vmul.f32 %v486, %v493
      %v498 = vld [vmem:[%s2] sm:$0xff]
      %500 = vset.pattern.permute.xlu0 0
      %501 = vperm.xlu0 %500, %v498
      %v502 = vpop.permute.xlu0 %501
      %v504 = vadd.f32 %v495, %v502
      %v505 = vadd.f32 %v496, %v502
      %v506 = vadd.f32 %v497, %v502
      %vm507 = vcmp.gt.f32.partialorder %v504, 0.0
      %vm508 = vcmp.gt.f32.partialorder %v505, 0.0
      %vm509 = vcmp.gt.f32.partialorder %v506, 0.0
      %v510 = vmul.f32 %v504, 0.01
      %v511 = vmul.f32 %v505, 0.01
      %v512 = vmul.f32 %v506, 0.01
      %v513 = vsel %vm507, %v504, %v510
      %v514 = vsel %vm508, %v505, %v511
      %v515 = vsel %vm509, %v506, %v512
      %516 = vst [vmem:[%s197] sm:$0xff] %v513
      %517 = vst [vmem:[%s197 + $0x8] sm:$0xff] %v514
      %518 = vst [vmem:[%s197 + $0x10] sm:$0xff] %v515
      %p519 = scmp.lt.s32.totalorder %s15, 1
      %s520 = scalar_select %p519, %s15, 1
      %s521 = smul.addr %s520, 3
      %s522 = smul.addr %s521, 8
      %s523 = scalar_lea.vmem %s4, %s522
      // Predicated region
      $region37: #{ddense_encoder_initial_block.3} parent=35 // pred_check
        %p524 = pneg %p122
      $region38: #{ddense_encoder_initial_block.3} parent=35 // pred_check_branch
        %526 = sbr.rel (%p524) target = $region40
      $region39: #{ddense_encoder_initial_block.3} parent=35 // pred_region
        _
      $region40: #{ddense_encoder_initial_block.3} parent=35 // pred_fallthru
        _
    $region36: #{ddense_encoder_initial_block.3} parent=5 // pred_fallthru
      _
    %p527 = scmp.le.s32.totalorder 2, %s10
    // Predicated region
    $region41: #{ddense_encoder_initial_block.3} parent=5 // pred_check
      %p528 = pneg %p527
    $region42: #{ddense_encoder_initial_block.3} parent=5 // pred_check_branch
      %530 = sbr.rel (%p528) target = $region44
    $region43: #{ddense_encoder_initial_block.3} parent=5 // pred_region
      %s531 = ssub.s32 %s10, 2
      // Predicated region
      $region45: #{ddense_encoder_initial_block.3} parent=43 // pred_check
        %p532 = pneg %p128
      $region46: #{ddense_encoder_initial_block.3} parent=43 // pred_check_branch
        %534 = sbr.rel (%p532) target = $region48
      $region47: #{ddense_encoder_initial_block.3} parent=43 // pred_region
        %p535 = scmp.lt.s32.totalorder %s16, 1
        %s536 = scalar_select %p535, %s16, 1
        %s537 = smul.addr %s536, 3
        %s538 = smul.addr %s537, 8
        %s539 = scalar_lea.vmem %s4, %s538
      $region48: #{ddense_encoder_initial_block.3} parent=43 // pred_fallthru
        _
    $region44: #{ddense_encoder_initial_block.3} parent=5 // pred_fallthru
      _
  $region6: #{ddense_encoder_initial_block.3} parent=0 // loop_footer
    %s14 = sadd.s32 1, %s10
  $region7: #{ddense_encoder_initial_block.3} parent=0 // loop_footer_branch
    %9 = sbr.rel target = $region3
  $region8: #{ddense_encoder_initial_block.3} parent=0 // loop_exit
    _

// kernel: ddense_encoder_initial_block.2
$region0: #{ddense_encoder_initial_block.2}
  #allocation0 [shape = 'u32[]', space=smem, size = 0x4, offset = 0x4, fixed_abs, tag = 'smem constant byte address 0x4 - core index']
  #allocation1 [shape = 'u32[144,128]{1,0:T(1,128)}', space=vmem, size = 0x12000, scoped, tag = 'internal scratch']
  %s0 = inlined_call_operand.vmem [shape: f32[8,36], index: 0, kind: input, shape index: {}]
  %s1 = inlined_call_operand.vmem [shape: f32[1,384], index: 1, kind: input, shape index: {}]
  %s2 = inlined_call_operand.vmem [shape: f32[2,4,384], index: 2, kind: input, shape index: {}]
  %s3 = inlined_call_operand.vmem [shape: f32[2,16,1], index: 3, kind: output, shape index: {}]
  %s4 = sld [smem:[#allocation0]]
  $region45: #{ddense_encoder_initial_block.2} parent=0
    _
  %s6 = ssub.s32 1, %s4
  %s7 = scalar_select 0, %s6, %s4
  loop: start=0, step=1, limit=4
  $region2: #{ddense_encoder_initial_block.2} parent=0 // loop_pre_header
    _
  $region3: #{ddense_encoder_initial_block.2} parent=0 // loop_header
    %s9 = sphi 0, %s13
    %p10 = scmp.ge.s32.totalorder %s9, 4
    %s17 = sphi 0, %s17
    %s19 = sphi 0, %s17
    %s20 = sphi 0, %s19
    %s34 = sphi 0, %s20
    %s38 = sphi 0, %s38
    %s40 = sphi 0, %s38
    %s41 = sphi 0, %s40
    %s55 = sphi 0, %s41
    %s61 = sphi 0, %s63
    %s64 = sphi 0, %s61
    %s65 = sphi 0, %s64
    %s81 = sphi 0, %s65
    %s87 = sphi 0, %s89
    %s90 = sphi 0, %s87
    %s91 = sphi 0, %s90
    %s107 = sphi 0, %s91
  $region4: #{ddense_encoder_initial_block.2} parent=0 // loop_header_branch
    %12 = sbr.rel (%p10) target = $region8
  $region5: #{ddense_encoder_initial_block.2} parent=0 // loop_body
    %s14 = ssub.s32 %s9, 1
    %s15 = ssub.s32 %s9, 2
    %s16 = sadd.s32 %s9, 1
    %s18 = sadd.s32 %s17, 1
    %p21 = scmp.eq.s32.totalorder %s9, 1
    %p22 = scmp.ne.s32.totalorder %s17, %s19
    %p23 = scmp.eq.s32.totalorder %s9, 0
    %p24 = por %p22, %p23
    %p25 = scmp.ne.s32.totalorder %s17, %s19
    %p26 = scmp.eq.s32.totalorder %s14, 1
    %p27 = por %p25, %p26
    %p28 = scmp.ne.s32.totalorder %s19, %s20
    %p29 = scmp.eq.s32.totalorder %s14, 0
    %p30 = por %p28, %p29
    %p31 = scmp.ne.s32.totalorder %s19, %s20
    %p32 = scmp.eq.s32.totalorder %s15, 1
    %p33 = por %p31, %p32
    %p35 = scmp.ne.s32.totalorder %s20, %s34
    %p36 = scmp.eq.s32.totalorder %s15, 0
    %p37 = por %p35, %p36
    %s39 = sadd.s32 %s38, 1
    %p42 = scmp.eq.s32.totalorder %s9, 1
    %p43 = scmp.ne.s32.totalorder %s38, %s40
    %p44 = scmp.eq.s32.totalorder %s9, 0
    %p45 = por %p43, %p44
    %p46 = scmp.ne.s32.totalorder %s38, %s40
    %p47 = scmp.eq.s32.totalorder %s14, 1
    %p48 = por %p46, %p47
    %p49 = scmp.ne.s32.totalorder %s40, %s41
    %p50 = scmp.eq.s32.totalorder %s14, 0
    %p51 = por %p49, %p50
    %p52 = scmp.ne.s32.totalorder %s40, %s41
    %p53 = scmp.eq.s32.totalorder %s15, 1
    %p54 = por %p52, %p53
    %p56 = scmp.ne.s32.totalorder %s41, %s55
    %p57 = scmp.eq.s32.totalorder %s15, 0
    %p58 = por %p56, %p57
    %s59 = ssub.s32 %s9, %s16
    %p60 = scmp.eq.s32.totalorder %s59, 0
    %s62 = sadd.s32 %s61, 1
    %s63 = scalar_select %p60, %s61, %s62
    %p66 = pneg %p60
    %p67 = scmp.eq.s32.totalorder %s9, 1
    %p68 = por %p66, %p67
    %p69 = scmp.ne.s32.totalorder %s61, %s64
    %p70 = scmp.eq.s32.totalorder %s9, 0
    %p71 = por %p69, %p70
    %p72 = scmp.ne.s32.totalorder %s61, %s64
    %p73 = scmp.eq.s32.totalorder %s14, 1
    %p74 = por %p72, %p73
    %p75 = scmp.ne.s32.totalorder %s64, %s65
    %p76 = scmp.eq.s32.totalorder %s14, 0
    %p77 = por %p75, %p76
    %p78 = scmp.ne.s32.totalorder %s64, %s65
    %p79 = scmp.eq.s32.totalorder %s15, 1
    %p80 = por %p78, %p79
    %p82 = scmp.ne.s32.totalorder %s65, %s81
    %p83 = scmp.eq.s32.totalorder %s15, 0
    %p84 = por %p82, %p83
    %s85 = ssub.s32 %s9, %s16
    %p86 = scmp.eq.s32.totalorder %s85, 0
    %s88 = sadd.s32 %s87, 1
    %s89 = scalar_select %p86, %s87, %s88
    %p92 = pneg %p86
    %p93 = scmp.eq.s32.totalorder %s9, 1
    %p94 = por %p92, %p93
    %p95 = scmp.ne.s32.totalorder %s87, %s90
    %p96 = scmp.eq.s32.totalorder %s9, 0
    %p97 = por %p95, %p96
    %p98 = scmp.ne.s32.totalorder %s87, %s90
    %p99 = scmp.eq.s32.totalorder %s14, 1
    %p100 = por %p98, %p99
    %p101 = scmp.ne.s32.totalorder %s90, %s91
    %p102 = scmp.eq.s32.totalorder %s14, 0
    %p103 = por %p101, %p102
    %p104 = scmp.ne.s32.totalorder %s90, %s91
    %p105 = scmp.eq.s32.totalorder %s15, 1
    %p106 = por %p104, %p105
    %p108 = scmp.ne.s32.totalorder %s91, %s107
    %p109 = scmp.eq.s32.totalorder %s15, 0
    %p110 = por %p108, %p109
    %p111 = scmp.le.s32.totalorder 1, %s9
    %p112 = scmp.lt.s32.totalorder %s9, 3
    %p113 = pnand %p111, %p112
    %p114 = pneg %p113
    // Predicated region
    $region9: #{ddense_encoder_initial_block.2} parent=5 // pred_check
      _
    $region10: #{ddense_encoder_initial_block.2} parent=5 // pred_check_branch
      %116 = sbr.rel (%p113) target = $region12
    $region11: #{ddense_encoder_initial_block.2} parent=5 // pred_region
      %s117 = ssub.s32 %s9, 1
      // Predicated region
      $region13: #{ddense_encoder_initial_block.2} parent=11 // pred_check
        %p118 = pneg %p30
      $region14: #{ddense_encoder_initial_block.2} parent=11 // pred_check_branch
        %120 = sbr.rel (%p118) target = $region16
      $region15: #{ddense_encoder_initial_block.2} parent=11 // pred_region
        _
      $region16: #{ddense_encoder_initial_block.2} parent=11 // pred_fallthru
        _
      // Predicated region
      $region17: #{ddense_encoder_initial_block.2} parent=11 // pred_check
        %p121 = pneg %p51
      $region18: #{ddense_encoder_initial_block.2} parent=11 // pred_check_branch
        %123 = sbr.rel (%p121) target = $region20
      $region19: #{ddense_encoder_initial_block.2} parent=11 // pred_region
        _
      $region20: #{ddense_encoder_initial_block.2} parent=11 // pred_fallthru
        _
    $region12: #{ddense_encoder_initial_block.2} parent=5 // pred_fallthru
      _
    %p124 = scmp.lt.s32.totalorder %s9, 2
    // Predicated region
    $region21: #{ddense_encoder_initial_block.2} parent=5 // pred_check
      %p125 = pneg %p124
    $region22: #{ddense_encoder_initial_block.2} parent=5 // pred_check_branch
      %127 = sbr.rel (%p125) target = $region24
    $region23: #{ddense_encoder_initial_block.2} parent=5 // pred_region
      // Predicated region
      $region25: #{ddense_encoder_initial_block.2} parent=23 // pred_check
        %p128 = pneg %p71
      $region26: #{ddense_encoder_initial_block.2} parent=23 // pred_check_branch
        %130 = sbr.rel (%p128) target = $region28
      $region27: #{ddense_encoder_initial_block.2} parent=23 // pred_region
        %p131 = scmp.lt.s32.totalorder %s9, 1
        %s132 = scalar_select %p131, %s9, 1
        %s133 = smul.addr %s132, 3
        %s134 = smul.addr %s133, 4
        %s135 = scalar_lea.vmem %s2, %s134
      $region28: #{ddense_encoder_initial_block.2} parent=23 // pred_fallthru
        _
    $region24: #{ddense_encoder_initial_block.2} parent=5 // pred_fallthru
      _
    %p136 = scmp.le.s32.totalorder 1, %s9
    %p137 = scmp.lt.s32.totalorder %s9, 3
    %p138 = pnand %p136, %p137
    %p139 = pneg %p138
    // Predicated region
    $region29: #{ddense_encoder_initial_block.2} parent=5 // pred_check
      _
    $region30: #{ddense_encoder_initial_block.2} parent=5 // pred_check_branch
      %141 = sbr.rel (%p138) target = $region32
    $region31: #{ddense_encoder_initial_block.2} parent=5 // pred_region
      %s142 = ssub.s32 %s9, 1
      %p143 = pneg %p30
      %p144 = pneg %p27
      %p145 = pneg %p51
      %p146 = pneg %p48
      %p147 = scmp.lt.s32.totalorder %s14, 1
      %s148 = scalar_select %p147, %s14, 1
      %s149 = smul.addr %s148, 3
      %s150 = smul.addr %s149, 4
      %s151 = scalar_lea.vmem %s2, %s150
      %p152 = pneg %p77
      %p153 = pneg %p74
      %p154 = pneg %p103
      %p155 = pneg %p100
      %p156 = scmp.lt.s32.totalorder %s14, 1
      %s157 = scalar_select %p156, %s14, 1
      %s158 = smul.addr %s157, 2
      %s159 = smul.addr %s158, 8
      %s160 = scalar_lea.vmem %s3, %s159
      %p161 = scmp.lt.s32.totalorder %s14, 1
      %s162 = scalar_select %p161, %s14, 1
      %s163 = smul.addr %s162, 3
      %s164 = smul.addr %s163, 4
      %s165 = scalar_lea.vmem %s2, %s164
      %p166 = scmp.lt.s32.totalorder %s14, 1
      %s167 = scalar_select %p166, %s14, 1
      %s168 = smul.addr %s167, 2
      %s169 = smul.addr %s168, 8
      %s170 = scalar_lea.vmem %s3, %s169
      %v171 = vld [vmem:[%s165] sm:$0xff]
      %v172 = vld [vmem:[%s165 + $0x8] sm:$0xf]
      %v174 = vcombine.high %v171, %v171
      %176 = vrot.lane.b32.xlu0 %v171, 19
      %v177 = vpop.permute.xlu0 %176
      %178 = vrot.lane.b32.xlu0 %v174, 19
      %v179 = vpop.permute.xlu0 %178
      %180 = vrot.lane.b32.xlu0 %v172, 19
      %v181 = vpop.permute.xlu0 %180
      %v182 = vlaneseq
      %v183 = vand.u32 %v182, 127
      %vm184 = vcmp.lt.s32.totalorder %v183, 19
      %v185 = vsel %vm184, %v179, %v181
      %v186 = vsel %vm184, %v177, %v179
      %v187 = vsel %vm184, %v181, %v177
      %188 = vrot.lane.b32.xlu0 %v171, 18
      %v189 = vpop.permute.xlu0 %188
      %190 = vrot.lane.b32.xlu0 %v174, 18
      %v191 = vpop.permute.xlu0 %190
      %192 = vrot.lane.b32.xlu0 %v172, 18
      %v193 = vpop.permute.xlu0 %192
      %vm194 = vcmp.lt.s32.totalorder %v183, 18
      %v195 = vsel %vm194, %v191, %v193
      %v196 = vsel %vm194, %v189, %v191
      %v197 = vsel %vm194, %v193, %v189
      %198 = vrot.lane.b32.xlu0 %v171, 17
      %v199 = vpop.permute.xlu0 %198
      %200 = vrot.lane.b32.xlu0 %v174, 17
      %v201 = vpop.permute.xlu0 %200
      %202 = vrot.lane.b32.xlu0 %v172, 17
      %v203 = vpop.permute.xlu0 %202
      %vm204 = vcmp.lt.s32.totalorder %v183, 17
      %v205 = vsel %vm204, %v201, %v203
      %v206 = vsel %vm204, %v199, %v201
      %v207 = vsel %vm204, %v203, %v199
      %208 = vrot.lane.b32.xlu0 %v171, 1
      %v209 = vpop.permute.xlu0 %208
      %210 = vrot.lane.b32.xlu0 %v174, 1
      %v211 = vpop.permute.xlu0 %210
      %212 = vrot.lane.b32.xlu0 %v172, 1
      %v213 = vpop.permute.xlu0 %212
      %vm214 = vcmp.lt.s32.totalorder %v183, 1
      %v215 = vsel %vm214, %v211, %v213
      %v216 = vsel %vm214, %v209, %v211
      %v217 = vsel %vm214, %v213, %v209
      %218 = vrot.lane.b32.xlu0 %v171, 127
      %v219 = vpop.permute.xlu0 %218
      %220 = vrot.lane.b32.xlu0 %v174, 127
      %v221 = vpop.permute.xlu0 %220
      %222 = vrot.lane.b32.xlu0 %v172, 127
      %v223 = vpop.permute.xlu0 %222
      %vm224 = vcmp.lt.s32.totalorder %v183, 127
      %v225 = vsel %vm224, %v221, %v223
      %v226 = vsel %vm224, %v219, %v221
      %v227 = vsel %vm224, %v223, %v219
      %228 = vrot.lane.b32.xlu0 %v171, 111
      %v229 = vpop.permute.xlu0 %228
      %230 = vrot.lane.b32.xlu0 %v174, 111
      %v231 = vpop.permute.xlu0 %230
      %232 = vrot.lane.b32.xlu0 %v172, 111
      %v233 = vpop.permute.xlu0 %232
      %vm234 = vcmp.lt.s32.totalorder %v183, 111
      %v235 = vsel %vm234, %v231, %v233
      %v236 = vsel %vm234, %v229, %v231
      %v237 = vsel %vm234, %v233, %v229
      %238 = vrot.lane.b32.xlu0 %v171, 110
      %v239 = vpop.permute.xlu0 %238
      %240 = vrot.lane.b32.xlu0 %v174, 110
      %v241 = vpop.permute.xlu0 %240
      %242 = vrot.lane.b32.xlu0 %v172, 110
      %v243 = vpop.permute.xlu0 %242
      %vm244 = vcmp.lt.s32.totalorder %v183, 110
      %v245 = vsel %vm244, %v241, %v243
      %v246 = vsel %vm244, %v239, %v241
      %v247 = vsel %vm244, %v243, %v239
      %248 = vrot.lane.b32.xlu0 %v171, 109
      %v249 = vpop.permute.xlu0 %248
      %250 = vrot.lane.b32.xlu0 %v174, 109
      %v251 = vpop.permute.xlu0 %250
      %252 = vrot.lane.b32.xlu0 %v172, 109
      %v253 = vpop.permute.xlu0 %252
      %vm254 = vcmp.lt.s32.totalorder %v183, 109
      %v255 = vsel %vm254, %v251, %v253
      %v256 = vsel %vm254, %v249, %v251
      %v257 = vsel %vm254, %v253, %v249
      %v261 = vrot.slane %v197, 4
      %v262 = vrot.slane %v196, 4
      %v263 = vrot.slane %v195, 4
      %v270 = vrot.slane %v217, 4
      %v271 = vrot.slane %v216, 4
      %v272 = vrot.slane %v215, 4
      %v279 = vrot.slane %v226, 4
      %v280 = vrot.slane %v225, 4
      %v281 = vrot.slane %v227, 4
      %v288 = vrot.slane %v246, 4
      %v289 = vrot.slane %v245, 4
      %v290 = vrot.slane %v247, 4
      %vm294 = vcmask 1043456
      %v295 = vsel %vm294, %v187, %v261
      %v296 = vsel %vm294, %v186, %v262
      %v297 = vsel %vm294, %v185, %v263
      %v298 = vsel %vm294, %v207, %v270
      %v299 = vsel %vm294, %v206, %v271
      %v300 = vsel %vm294, %v205, %v272
      %v301 = vsel %vm294, %v171, %v279
      %v302 = vsel %vm294, %v174, %v280
      %v303 = vsel %vm294, %v172, %v281
      %v304 = vsel %vm294, %v236, %v288
      %v305 = vsel %vm294, %v235, %v289
      %v306 = vsel %vm294, %v237, %v290
      %v307 = vld [vmem:[%s0] sm:$0xff]
      %vm308 = vcmask 293888
      %v310 = vsel %vm308, %v307, 0
      %v313 = vsel %vm294, %v256, 0
      %v316 = vsel %vm294, %v255, 0
      %v319 = vsel %vm294, %v257, 0
      %321 = vmatprep.subr.mxu0 0.0
      %322 = vmatpush1.msra.mxu0 0.0
      %323 = vmatprep.subr.mxu0 0.0
      %324 = vmatpush1.msra.mxu0 0.0
      %325 = vmatprep.subr.mxu0 0.0
      %326 = vmatpush1.msra.mxu0 0.0
      %327 = vmatprep.subr.mxu0 0.0
      %328 = vmatpush1.msra.mxu0 0.0
      %329 = vmatprep.subr.mxu0 0.0
      %330 = vmatpush1.msra.mxu0 0.0
      %331 = vmatprep.subr.mxu0 0.0
      %332 = vmatpush1.msra.mxu0 0.0
      %333 = vmatprep.subr.mxu0 0.0
      %334 = vmatpush1.msra.mxu0 0.0
      %335 = vmatprep.subr.mxu0 0.0
      %336 = vmatpush1.msra.mxu0 0.0
      %337 = vmatprep.subr.mxu0 0.0
      %338 = vmatpush1.msra.mxu0 0.0
      %339 = vmatprep.subr.mxu0 0.0
      %340 = vmatpush1.msra.mxu0 0.0
      %341 = vmatprep.subr.mxu0 0.0
      %342 = vmatpush1.msra.mxu0 0.0
      %343 = vmatprep.subr.mxu0 %v316
      %344 = vmatpush1.msra.mxu0 %v313
      %345 = vmatprep.subr.mxu0 %v305
      %346 = vmatpush1.msra.mxu0 %v304
      %347 = vmatprep.subr.mxu0 %v302
      %348 = vmatpush1.msra.mxu0 %v301
      %349 = vmatprep.subr.mxu0 %v299
      %350 = vmatpush1.msra.mxu0 %v298
      %351 = vmatprep.subr.mxu0 %v296
      %352 = vmatpush1.msra.mxu0 %v295
      %353 = vmatprep.subr.mxu0 0.0
      %354 = vmatpush2.msra.mxu0 0.0
      %355 = vmatprep.subr.mxu0 0.0
      %356 = vmatpush2.msra.mxu0 0.0
      %357 = vmatprep.subr.mxu0 0.0
      %358 = vmatpush2.msra.mxu0 0.0
      %359 = vmatprep.subr.mxu0 0.0
      %360 = vmatpush2.msra.mxu0 0.0
      %361 = vmatprep.subr.mxu0 0.0
      %362 = vmatpush2.msra.mxu0 0.0
      %363 = vmatprep.subr.mxu0 0.0
      %364 = vmatpush2.msra.mxu0 0.0
      %365 = vmatprep.subr.mxu0 0.0
      %366 = vmatpush2.msra.mxu0 0.0
      %367 = vmatprep.subr.mxu0 0.0
      %368 = vmatpush2.msra.mxu0 0.0
      %369 = vmatprep.subr.mxu0 0.0
      %370 = vmatpush2.msra.mxu0 0.0
      %371 = vmatprep.subr.mxu0 0.0
      %372 = vmatpush2.msra.mxu0 0.0
      %373 = vmatprep.subr.mxu0 0.0
      %374 = vmatpush2.msra.mxu0 0.0
      %375 = vmatprep.subr.mxu0 0.0
      %376 = vmatpush2.msra.mxu0 0.0
      %377 = vmatprep.subr.mxu0 0.0
      %378 = vmatpush2.msra.mxu0 0.0
      %379 = vmatprep.subr.mxu0 0.0
      %380 = vmatpush2.msra.mxu0 0.0
      %381 = vmatprep.subr.mxu0 0.0
      %382 = vmatpush2.msra.mxu0 0.0
      %383 = vmatprep.subr.mxu0 0.0
      %384 = vmatpush2.msra.mxu0 0.0
      %385 = vmatprep.mubr.f32.mxu0 0.0
      %386 = vmatmul.mubr.f32.gmra.mxu0 %v310
      %v387 = vpop.f32.mrf.mxu0
      %v388 = vadd.f32 0.0, %v387
      %v389 = vpop.f32.mrf.mxu0
      %v390 = vadd.f32 0.0, %v389
      %391 = vdwg.mxu0
      %392 = vmatprep.subr.mxu0 0.0
      %393 = vmatpush1.msra.mxu0 0.0
      %394 = vmatprep.subr.mxu0 0.0
      %395 = vmatpush1.msra.mxu0 0.0
      %396 = vmatprep.subr.mxu0 0.0
      %397 = vmatpush1.msra.mxu0 0.0
      %398 = vmatprep.subr.mxu0 0.0
      %399 = vmatpush1.msra.mxu0 0.0
      %400 = vmatprep.subr.mxu0 0.0
      %401 = vmatpush1.msra.mxu0 0.0
      %402 = vmatprep.subr.mxu0 0.0
      %403 = vmatpush1.msra.mxu0 0.0
      %404 = vmatprep.subr.mxu0 0.0
      %405 = vmatpush1.msra.mxu0 0.0
      %406 = vmatprep.subr.mxu0 0.0
      %407 = vmatpush1.msra.mxu0 0.0
      %408 = vmatprep.subr.mxu0 0.0
      %409 = vmatpush1.msra.mxu0 0.0
      %410 = vmatprep.subr.mxu0 0.0
      %411 = vmatpush1.msra.mxu0 0.0
      %412 = vmatprep.subr.mxu0 0.0
      %413 = vmatpush1.msra.mxu0 0.0
      %414 = vmatprep.subr.mxu0 0.0
      %415 = vmatpush1.msra.mxu0 %v319
      %416 = vmatprep.subr.mxu0 0.0
      %417 = vmatpush1.msra.mxu0 %v306
      %418 = vmatprep.subr.mxu0 0.0
      %419 = vmatpush1.msra.mxu0 %v303
      %420 = vmatprep.subr.mxu0 0.0
      %421 = vmatpush1.msra.mxu0 %v300
      %422 = vmatprep.subr.mxu0 0.0
      %423 = vmatpush1.msra.mxu0 %v297
      %424 = vmatprep.subr.mxu0 0.0
      %425 = vmatpush2.msra.mxu0 0.0
      %426 = vmatprep.subr.mxu0 0.0
      %427 = vmatpush2.msra.mxu0 0.0
      %428 = vmatprep.subr.mxu0 0.0
      %429 = vmatpush2.msra.mxu0 0.0
      %430 = vmatprep.subr.mxu0 0.0
      %431 = vmatpush2.msra.mxu0 0.0
      %432 = vmatprep.subr.mxu0 0.0
      %433 = vmatpush2.msra.mxu0 0.0
      %434 = vmatprep.subr.mxu0 0.0
      %435 = vmatpush2.msra.mxu0 0.0
      %436 = vmatprep.subr.mxu0 0.0
      %437 = vmatpush2.msra.mxu0 0.0
      %438 = vmatprep.subr.mxu0 0.0
      %439 = vmatpush2.msra.mxu0 0.0
      %440 = vmatprep.subr.mxu0 0.0
      %441 = vmatpush2.msra.mxu0 0.0
      %442 = vmatprep.subr.mxu0 0.0
      %443 = vmatpush2.msra.mxu0 0.0
      %444 = vmatprep.subr.mxu0 0.0
      %445 = vmatpush2.msra.mxu0 0.0
      %446 = vmatprep.subr.mxu0 0.0
      %447 = vmatpush2.msra.mxu0 0.0
      %448 = vmatprep.subr.mxu0 0.0
      %449 = vmatpush2.msra.mxu0 0.0
      %450 = vmatprep.subr.mxu0 0.0
      %451 = vmatpush2.msra.mxu0 0.0
      %452 = vmatprep.subr.mxu0 0.0
      %453 = vmatpush2.msra.mxu0 0.0
      %454 = vmatprep.subr.mxu0 0.0
      %455 = vmatpush2.msra.mxu0 0.0
      %456 = vmatprep.mubr.f32.mxu0 0.0
      %457 = vmatmul.mubr.f32.gmra.mxu0 %v310
      %v458 = vpop.f32.mrf.mxu0
      %v459 = vadd.f32 0.0, %v458
      %v460 = vpop.f32.mrf.mxu0
      %461 = vdwg.mxu0
      %v462 = vmul.f32 %v388, %v388
      %v463 = vmul.f32 %v390, %v390
      %v464 = vmul.f32 %v459, %v459
      %v465 = vld [vmem:[%s1] sm:$0x7]
      %v467 = vlaneseq
      %v468 = vshrl.u32 %v467, 7
      %v469 = vsub.s32 0, %v468
      %v470 = vrot.slane %v465, %v469
      %v471 = vlaneseq
      %v472 = vshrl.u32 %v471, 7
      %v473 = vsub.s32 1, %v472
      %v474 = vrot.slane %v465, %v473
      %v475 = vlaneseq
      %v476 = vshrl.u32 %v475, 7
      %v477 = vsub.s32 2, %v476
      %v478 = vrot.slane %v465, %v477
      %v482 = vmul.f32 %v388, %v470
      %v483 = vmul.f32 %v390, %v474
      %v484 = vmul.f32 %v459, %v478
      %v485 = vmul.f32 %v462, %v470
      %v486 = vmul.f32 %v463, %v474
      %v487 = vmul.f32 %v464, %v478
      %488 = vmatprep.subr.mxu0 0.0
      %489 = vmatpush1.msra.mxu0 1.0
      %490 = vmatprep.subr.mxu0 0.0
      %491 = vmatpush1.msra.mxu0 1.0
      %492 = vmatprep.subr.mxu0 0.0
      %493 = vmatpush1.msra.mxu0 1.0
      %494 = vmatprep.subr.mxu0 0.0
      %495 = vmatpush1.msra.mxu0 1.0
      %496 = vmatprep.subr.mxu0 0.0
      %497 = vmatpush1.msra.mxu0 1.0
      %498 = vmatprep.subr.mxu0 0.0
      %499 = vmatpush1.msra.mxu0 1.0
      %500 = vmatprep.subr.mxu0 0.0
      %501 = vmatpush1.msra.mxu0 1.0
      %502 = vmatprep.subr.mxu0 0.0
      %503 = vmatpush1.msra.mxu0 1.0
      %504 = vmatprep.subr.mxu0 0.0
      %505 = vmatpush1.msra.mxu0 1.0
      %506 = vmatprep.subr.mxu0 0.0
      %507 = vmatpush1.msra.mxu0 1.0
      %508 = vmatprep.subr.mxu0 0.0
      %509 = vmatpush1.msra.mxu0 1.0
      %510 = vmatprep.subr.mxu0 0.0
      %511 = vmatpush1.msra.mxu0 1.0
      %512 = vmatprep.subr.mxu0 0.0
      %513 = vmatpush1.msra.mxu0 1.0
      %514 = vmatprep.subr.mxu0 0.0
      %515 = vmatpush1.msra.mxu0 1.0
      %516 = vmatprep.subr.mxu0 0.0
      %517 = vmatpush1.msra.mxu0 1.0
      %518 = vmatprep.subr.mxu0 0.0
      %519 = vmatpush1.msra.mxu0 1.0
      %520 = vmatprep.subr.mxu0 0.0
      %521 = vmatpush2.msra.mxu0 1.0
      %522 = vmatprep.subr.mxu0 0.0
      %523 = vmatpush2.msra.mxu0 1.0
      %524 = vmatprep.subr.mxu0 0.0
      %525 = vmatpush2.msra.mxu0 1.0
      %526 = vmatprep.subr.mxu0 0.0
      %527 = vmatpush2.msra.mxu0 1.0
      %528 = vmatprep.subr.mxu0 0.0
      %529 = vmatpush2.msra.mxu0 1.0
      %530 = vmatprep.subr.mxu0 0.0
      %531 = vmatpush2.msra.mxu0 1.0
      %532 = vmatprep.subr.mxu0 0.0
      %533 = vmatpush2.msra.mxu0 1.0
      %534 = vmatprep.subr.mxu0 0.0
      %535 = vmatpush2.msra.mxu0 1.0
      %536 = vmatprep.subr.mxu0 0.0
      %537 = vmatpush2.msra.mxu0 1.0
      %538 = vmatprep.subr.mxu0 0.0
      %539 = vmatpush2.msra.mxu0 1.0
      %540 = vmatprep.subr.mxu0 0.0
      %541 = vmatpush2.msra.mxu0 1.0
      %542 = vmatprep.subr.mxu0 0.0
      %543 = vmatpush2.msra.mxu0 1.0
      %544 = vmatprep.subr.mxu0 0.0
      %545 = vmatpush2.msra.mxu0 1.0
      %546 = vmatprep.subr.mxu0 0.0
      %547 = vmatpush2.msra.mxu0 1.0
      %548 = vmatprep.subr.mxu0 0.0
      %549 = vmatpush2.msra.mxu0 1.0
      %550 = vmatprep.subr.mxu0 0.0
      %551 = vmatpush2.msra.mxu0 1.0
      %552 = vmatprep.mubr.f32.mxu0 %v483
      %553 = vmatmul.mubr.f32.gmra.mxu0 %v482
      %v554 = vpop.f32.mrf.mxu0
      %v555 = vadd.f32 0.0, %v554
      %v556 = vpop.f32.mrf.mxu0
      %557 = vmatprep.mubr.f32.mxu0 %v486
      %558 = vmatmul.mubr.f32.gmra.mxu0 %v485
      %v559 = vpop.f32.mrf.mxu0
      %v560 = vadd.f32 0.0, %v559
      %v561 = vpop.f32.mrf.mxu0
      %562 = vdwg.mxu0
      %563 = vmatprep.subr.mxu0 0.0
      %564 = vmatpush1.msra.mxu0 1.0
      %565 = vmatprep.subr.mxu0 0.0
      %566 = vmatpush1.msra.mxu0 1.0
      %567 = vmatprep.subr.mxu0 0.0
      %568 = vmatpush1.msra.mxu0 1.0
      %569 = vmatprep.subr.mxu0 0.0
      %570 = vmatpush1.msra.mxu0 1.0
      %571 = vmatprep.subr.mxu0 0.0
      %572 = vmatpush1.msra.mxu0 1.0
      %573 = vmatprep.subr.mxu0 0.0
      %574 = vmatpush1.msra.mxu0 1.0
      %575 = vmatprep.subr.mxu0 0.0
      %576 = vmatpush1.msra.mxu0 1.0
      %577 = vmatprep.subr.mxu0 0.0
      %578 = vmatpush1.msra.mxu0 1.0
      %579 = vmatprep.subr.mxu0 0.0
      %580 = vmatpush1.msra.mxu0 1.0
      %581 = vmatprep.subr.mxu0 0.0
      %582 = vmatpush1.msra.mxu0 1.0
      %583 = vmatprep.subr.mxu0 0.0
      %584 = vmatpush1.msra.mxu0 1.0
      %585 = vmatprep.subr.mxu0 0.0
      %586 = vmatpush1.msra.mxu0 1.0
      %587 = vmatprep.subr.mxu0 0.0
      %588 = vmatpush1.msra.mxu0 1.0
      %589 = vmatprep.subr.mxu0 0.0
      %590 = vmatpush1.msra.mxu0 1.0
      %591 = vmatprep.subr.mxu0 0.0
      %592 = vmatpush1.msra.mxu0 1.0
      %593 = vmatprep.subr.mxu0 0.0
      %594 = vmatpush1.msra.mxu0 1.0
      %595 = vmatprep.subr.mxu0 0.0
      %596 = vmatpush2.msra.mxu0 0.0
      %597 = vmatprep.subr.mxu0 0.0
      %598 = vmatpush2.msra.mxu0 0.0
      %599 = vmatprep.subr.mxu0 0.0
      %600 = vmatpush2.msra.mxu0 0.0
      %601 = vmatprep.subr.mxu0 0.0
      %602 = vmatpush2.msra.mxu0 0.0
      %603 = vmatprep.subr.mxu0 0.0
      %604 = vmatpush2.msra.mxu0 0.0
      %605 = vmatprep.subr.mxu0 0.0
      %606 = vmatpush2.msra.mxu0 0.0
      %607 = vmatprep.subr.mxu0 0.0
      %608 = vmatpush2.msra.mxu0 0.0
      %609 = vmatprep.subr.mxu0 0.0
      %610 = vmatpush2.msra.mxu0 0.0
      %611 = vmatprep.subr.mxu0 0.0
      %612 = vmatpush2.msra.mxu0 0.0
      %613 = vmatprep.subr.mxu0 0.0
      %614 = vmatpush2.msra.mxu0 0.0
      %615 = vmatprep.subr.mxu0 0.0
      %616 = vmatpush2.msra.mxu0 0.0
      %617 = vmatprep.subr.mxu0 0.0
      %618 = vmatpush2.msra.mxu0 0.0
      %619 = vmatprep.subr.mxu0 0.0
      %620 = vmatpush2.msra.mxu0 0.0
      %621 = vmatprep.subr.mxu0 0.0
      %622 = vmatpush2.msra.mxu0 0.0
      %623 = vmatprep.subr.mxu0 0.0
      %624 = vmatpush2.msra.mxu0 0.0
      %625 = vmatprep.subr.mxu0 0.0
      %626 = vmatpush2.msra.mxu0 0.0
      %627 = vmatprep.mubr.f32.mxu0 0.0
      %628 = vmatmul.mubr.f32.gmra.mxu0 %v484
      %v629 = vpop.f32.mrf.mxu0
      %v630 = vadd.f32 %v555, %v629
      %v631 = vpop.f32.mrf.mxu0
      %632 = vmatprep.mubr.f32.mxu0 0.0
      %633 = vmatmul.mubr.f32.gmra.mxu0 %v487
      %v634 = vpop.f32.mrf.mxu0
      %v635 = vadd.f32 %v560, %v634
      %v636 = vpop.f32.mrf.mxu0
      %637 = vdwg.mxu0
      %vm638 = vcmask 7168
      %639 = vst.msk [vmem:[%s170] sm:$0xff] %vm638, %v630
      %640 = vst.msk [vmem:[%s170 + $0x8] sm:$0xff] %vm638, %v635
      %p641 = scmp.lt.s32.totalorder %s14, 1
      %s642 = scalar_select %p641, %s14, 1
      %s643 = smul.addr %s642, 2
      %s644 = smul.addr %s643, 8
      %s645 = scalar_lea.vmem %s3, %s644
      // Predicated region
      $region33: #{ddense_encoder_initial_block.2} parent=31 // pred_check
        %p646 = pneg %p100
      $region34: #{ddense_encoder_initial_block.2} parent=31 // pred_check_branch
        %648 = sbr.rel (%p646) target = $region36
      $region35: #{ddense_encoder_initial_block.2} parent=31 // pred_region
        _
      $region36: #{ddense_encoder_initial_block.2} parent=31 // pred_fallthru
        _
    $region32: #{ddense_encoder_initial_block.2} parent=5 // pred_fallthru
      _
    %p649 = scmp.le.s32.totalorder 2, %s9
    // Predicated region
    $region37: #{ddense_encoder_initial_block.2} parent=5 // pred_check
      %p650 = pneg %p649
    $region38: #{ddense_encoder_initial_block.2} parent=5 // pred_check_branch
      %652 = sbr.rel (%p650) target = $region40
    $region39: #{ddense_encoder_initial_block.2} parent=5 // pred_region
      %s653 = ssub.s32 %s9, 2
      // Predicated region
      $region41: #{ddense_encoder_initial_block.2} parent=39 // pred_check
        %p654 = pneg %p106
      $region42: #{ddense_encoder_initial_block.2} parent=39 // pred_check_branch
        %656 = sbr.rel (%p654) target = $region44
      $region43: #{ddense_encoder_initial_block.2} parent=39 // pred_region
        %p657 = scmp.lt.s32.totalorder %s15, 1
        %s658 = scalar_select %p657, %s15, 1
        %s659 = smul.addr %s658, 2
        %s660 = smul.addr %s659, 8
        %s661 = scalar_lea.vmem %s3, %s660
      $region44: #{ddense_encoder_initial_block.2} parent=39 // pred_fallthru
        _
    $region40: #{ddense_encoder_initial_block.2} parent=5 // pred_fallthru
      _
  $region6: #{ddense_encoder_initial_block.2} parent=0 // loop_footer
    %s13 = sadd.s32 1, %s9
  $region7: #{ddense_encoder_initial_block.2} parent=0 // loop_footer_branch
    %8 = sbr.rel target = $region3
  $region8: #{ddense_encoder_initial_block.2} parent=0 // loop_exit
    _

</llo_original>
